<compile_context>
chip_gen: v7x
topology: tpu7x:2x2x1
jax: 0.10.0
libtpu: 0.0.40
codegen_flags: <defaults>
</compile_context>

<pallas_src>
import functools

import jax
import jax.numpy as jnp
from jax.experimental import pallas as pl
from jax.experimental.pallas import tpu as pltpu


class LambdaLayer:
    """JAX equivalent of the PyTorch LambdaLayer: forward(x) = lmbd(x)."""

    def __init__(self, lmbd):
        self.lmbd = lmbd

    def __call__(self, x):
        return self.lmbd(x)


# ----------------------------------------------------------------------------
# Helpers
# ----------------------------------------------------------------------------
def _round_up(x, m):
    return ((x + m - 1) // m) * m


def _cdiv(a, b):
    return (a + b - 1) // b


def _sublane_packing(dtype):
    """Minimum second-to-last-dim multiple for this dtype (8 f32, 16 bf16, 32 i8)."""
    itemsize = jnp.dtype(dtype).itemsize
    return 8 * max(1, 4 // itemsize)


def _device_budget():
    """(target input-tile bytes, vmem_limit_bytes) per TPU generation.

    Tile sizes amortize the ~0.35 us/grid-step overhead against each
    generation's HBM bandwidth while keeping 2x tile (double-buffer) + output
    comfortably inside the scoped VMEM limit we request.
    """
    try:
        kind = jax.devices()[0].device_kind.lower()
    except Exception:  # pragma: no cover - defensive only
        kind = ""
    if "v7" in kind or "7x" in kind:
        return 12 << 20, 32 << 20   # 64 MiB physical VMEM: 2x12 MiB stream fits
    if "v6" in kind:
        return 8 << 20, 48 << 20    # ~1.4 TB/s HBM: 8 MiB tile ~ 6 us >> step overhead
    return 4 << 20, 24 << 20        # v5e & unknown: conservative


# Set to e.g. (2 << 20) in production to let XLA's fused reduce handle tiny
# activations where pallas_call launch/glue overhead dominates.  Kept at 0 here
# so the demo below always exercises the Pallas kernels.
_XLA_FALLBACK_BYTES = 0


# ----------------------------------------------------------------------------
# Kernels
# ----------------------------------------------------------------------------
def _row_mean_kernel(x_ref, o_ref, *, inv_l, lane_out):
    # Path A: one block holds tile_r full rows. Cast to f32 in VMEM (VPU filler
    # under the DMA stream), reduce along the lane axis, scale by 1/L.
    x = x_ref[...].astype(jnp.float32)
    s = jnp.sum(x, axis=-1, keepdims=True) * inv_l          # (tile_r, 1) f32
    if lane_out:
        # Emit means along the lane axis -> unmasked lane-dense stores.
        # The (tile_r,1)->(1,tile_r) relayout uses the XLU, idle in this kernel.
        s = s.reshape(1, s.shape[0])
    o_ref[...] = s.astype(o_ref.dtype)


def _row_mean_acc_kernel(x_ref, o_ref, acc_ref, *, inv_l, lane_out, true_l,
                         tile_l, mask_tail):
    # Path B: L is tiled; accumulate partial sums in an f32 VMEM scratch that
    # stays resident across the (last, "arbitrary") reduction axis.
    k = pl.program_id(1)

    @pl.when(k == 0)
    def _():
        acc_ref[...] = jnp.zeros_like(acc_ref)

    x = x_ref[...].astype(jnp.float32)
    if mask_tail:
        # Zero the ragged L tail in-kernel instead of padding the array in HBM.
        col = jax.lax.broadcasted_iota(jnp.int32, x.shape, 1) + k * tile_l
        x = jnp.where(col < true_l, x, 0.0)
    acc_ref[...] += jnp.sum(x, axis=-1, keepdims=True)

    @pl.when(k == pl.num_programs(1) - 1)
    def _():
        s = acc_ref[...] * inv_l
        if lane_out:
            s = s.reshape(1, s.shape[0])
        o_ref[...] = s.astype(o_ref.dtype)


# ----------------------------------------------------------------------------
# Pallas wrapper: row-wise mean over the last axis of a 2-D slab.
#   Input : (R, L) any float dtype in HBM   (R = N*C rows, L = H*W per row)
#   Output: (R,) in the input dtype
# ----------------------------------------------------------------------------
def _pallas_row_mean(x2d, true_l, *, force_l_tiling=False, l_tile_cap=None):
    R, L = x2d.shape
    dtype = x2d.dtype
    itemsize = jnp.dtype(dtype).itemsize
    granule = _sublane_packing(dtype)
    inv_l = float(1.0 / true_l)

    tile_bytes, vmem_limit = _device_budget()
    # A path-A block of `granule` rows must still double-buffer within VMEM.
    single_block_cap = (vmem_limit - (4 << 20)) // 2

    row_bytes = L * itemsize
    cost = pl.CostEstimate(
        flops=int(R * L),
        transcendentals=0,
        bytes_accessed=int(R * L * itemsize + R * itemsize),
    )

    use_path_a = (not force_l_tiling) and (granule * row_bytes <= single_block_cap)

    if use_path_a:
        # ---- Path A: grid over row tiles, full L per block. ----
        tile_r = max(granule, (tile_bytes // max(1, row_bytes)) // granule * granule)
        if tile_r >= 128:
            tile_r = (tile_r // 128) * 128      # lane-width multiple -> lane-dense out
        if R <= tile_r:
            if R >= 2 * granule:
                # Keep >=2 row tiles so v7x can shard the "parallel" axis
                # across both TensorCores (neutral on 1-TC parts).
                tile_r = _round_up(_cdiv(R, 2), granule)
            else:
                tile_r = R                      # single full-dim block (always legal)
        grid_r = _cdiv(R, tile_r)
        lane_out = (grid_r == 1) or (tile_r % 128 == 0)

        if lane_out:
            out_shape = jax.ShapeDtypeStruct((1, grid_r * tile_r), dtype)
            out_spec = pl.BlockSpec((1, tile_r), lambda i: (0, i))
        else:
            out_shape = jax.ShapeDtypeStruct((grid_r * tile_r, 1), dtype)
            out_spec = pl.BlockSpec((tile_r, 1), lambda i: (i, 0))

        out = pl.pallas_call(
            functools.partial(_row_mean_kernel, inv_l=inv_l, lane_out=lane_out),
            out_shape=out_shape,
            grid_spec=pltpu.PrefetchScalarGridSpec(
                num_scalar_prefetch=0,
                grid=(grid_r,),
                in_specs=[pl.BlockSpec((tile_r, L), lambda i: (i, 0))],
                out_specs=out_spec,
            ),
            compiler_params=pltpu.CompilerParams(
                dimension_semantics=("parallel",),
                vmem_limit_bytes=vmem_limit,
            ),
            cost_estimate=cost,
        )(x2d)
        # Ragged tail rows (if any) are garbage and discarded here.
        return out.reshape(-1)[:R]

    # ---- Path B: (row tiles) x (L tiles) grid with resident f32 accumulator. ----
    tile_r = granule if R > granule else R      # full-dim block when R is tiny
    grid_r = _cdiv(R, tile_r)
    lane_out = (grid_r == 1) or (tile_r % 128 == 0)

    tile_l = max(128, (tile_bytes // max(1, tile_r * itemsize)) // 128 * 128)
    if l_tile_cap is not None:
        tile_l = min(tile_l, max(128, _round_up(l_tile_cap, 128)))
    if tile_l >= L:
        tile_l = L                               # single full-dim L block
    grid_l = _cdiv(L, tile_l)
    mask_tail = (L % tile_l) != 0                # zero-mask ragged L tail in-kernel

    if lane_out:
        out_shape = jax.ShapeDtypeStruct((1, grid_r * tile_r), dtype)
        out_spec = pl.BlockSpec((1, tile_r), lambda i, k: (0, i))
    else:
        out_shape = jax.ShapeDtypeStruct((grid_r * tile_r, 1), dtype)
        out_spec = pl.BlockSpec((tile_r, 1), lambda i, k: (i, 0))

    out = pl.pallas_call(
        functools.partial(
            _row_mean_acc_kernel, inv_l=inv_l, lane_out=lane_out,
            true_l=true_l, tile_l=tile_l, mask_tail=mask_tail),
        out_shape=out_shape,
        grid_spec=pltpu.PrefetchScalarGridSpec(
            num_scalar_prefetch=0,
            grid=(grid_r, grid_l),
            in_specs=[pl.BlockSpec((tile_r, tile_l), lambda i, k: (i, k))],
            out_specs=out_spec,
            scratch_shapes=[pltpu.VMEM((tile_r, 1), jnp.float32)],
        ),
        compiler_params=pltpu.CompilerParams(
            dimension_semantics=("parallel", "arbitrary"),
            vmem_limit_bytes=vmem_limit,
        ),
        cost_estimate=cost,
    )(x2d)
    return out.reshape(-1)[:R]


def spatial_mean_keepdim(x):
    """x: (N, C, H, W) -> (N, C, 1, 1); PyTorch x.mean(dim=(2, 3), keepdim=True)."""
    N, C, H, W = x.shape
    if x.size * jnp.dtype(x.dtype).itemsize <= _XLA_FALLBACK_BYTES:
        return jnp.mean(x, axis=(2, 3), keepdims=True)      # tiny-input fast path
    # Glue only: flatten to (N*C, H*W) in the NATIVE dtype; reduction runs in Pallas.
    x2d = x.reshape(N * C, H * W)
    m = _pallas_row_mean(x2d, H * W)               # (N*C,), dtype preserved
    return m.reshape(N, C, 1, 1)


if __name__ == "__main__":
    key = jax.random.PRNGKey(0)
    k1, k2, k3 = jax.random.split(key, 3)

    # LambdaLayer wrapping the Pallas-backed lambda (mirrors nn.Module usage).
    layer = LambdaLayer(spatial_mean_keepdim)

    # ---- f32 path (Path A, single full-dim block, lane-dense output). ----
    x = jax.random.normal(k1, (2, 4, 16, 16), dtype=jnp.float32)
    y = jax.block_until_ready(layer(x))
    y_ref = jnp.mean(x, axis=(2, 3), keepdims=True)
    assert y.shape == (2, 4, 1, 1), y.shape
    assert y.dtype == x.dtype
    assert jnp.allclose(y, y_ref, atol=1e-5, rtol=1e-5), "f32 mismatch vs reference"

    # ---- bf16 path: native-dtype DMA, f32 accumulation inside the kernel. ----
    xb = x.astype(jnp.bfloat16)
    yb = jax.block_until_ready(layer(xb))
    yb_ref = jnp.mean(xb.astype(jnp.float32), axis=(2, 3), keepdims=True)
    assert yb.dtype == jnp.bfloat16
    assert jnp.allclose(yb.astype(jnp.float32), yb_ref, atol=2e-2, rtol=2e-2), \
        "bf16 mismatch vs reference"

    # ---- Multi-tile row grid with a ragged tail block (no wrapper-side pad). ----
    x3 = jax.random.normal(k2, (2, 12, 16, 16), dtype=jnp.float32)   # R=24 -> 2 tiles of 16
    y3 = jax.block_until_ready(layer(x3))
    y3_ref = jnp.mean(x3, axis=(2, 3), keepdims=True)
    assert jnp.allclose(y3, y3_ref, atol=1e-5, rtol=1e-5), "ragged-row mismatch"

    # ---- Path B (L-tiled accumulator + in-kernel tail mask) exercised explicitly. ----
    x2d = jax.random.normal(k3, (8, 200), dtype=jnp.float32)         # L=200 -> masked tail
    mb = jax.block_until_ready(
        _pallas_row_mean(x2d, 200, force_l_tiling=True, l_tile_cap=128))
    assert jnp.allclose(mb, jnp.mean(x2d, axis=1), atol=1e-5, rtol=1e-5), \
        "L-tiled path mismatch vs reference"

    print("KERNEL_OK")
</pallas_src>

<mosaic_0001>
module attributes {stable_mosaic.version = 11 : i64} {
  func.func @_row_mean_kernel(%arg0: i32, %arg1: memref<8x256xf32, #tpu.memory_space<vmem>>, %arg2: memref<1x8xf32, #tpu.memory_space<vmem>>) attributes {dimension_semantics = [#tpu.dimension_semantics<parallel>], iteration_bounds = array<i64: 1>, scalar_prefetch = 0 : i64, scratch_operands = 0 : i64, tpu.core_type = #tpu.core_type<tc>, window_params = [{transform_indices = @transform_0, window_bounds = array<i64: 8, 256>}, {transform_indices = @transform_1, window_bounds = array<i64: 1, 8>}]} {
    %c0 = arith.constant 0 : index
    %c0_0 = arith.constant 0 : index
    %0 = vector.load %arg1[%c0, %c0_0] : memref<8x256xf32, #tpu.memory_space<vmem>>, vector<8x256xf32>
    %cst = arith.constant dense<0.000000e+00> : vector<8xf32>
    %1 = vector.multi_reduction <add>, %0, %cst [1] : vector<8x256xf32> to vector<8xf32>
    %2 = vector.shape_cast %1 : vector<8xf32> to vector<8x1xf32>
    %cst_1 = arith.constant 3.906250e-03 : f32
    %3 = vector.broadcast %cst_1 : f32 to vector<8x1xf32>
    %4 = arith.mulf %2, %3 : vector<8x1xf32>
    %5 = vector.shape_cast %4 : vector<8x1xf32> to vector<1x8xf32>
    %c0_2 = arith.constant 0 : index
    %c0_3 = arith.constant 0 : index
    %6 = vector.load %arg2[%c0_2, %c0_3] : memref<1x8xf32, #tpu.memory_space<vmem>>, vector<1x8xf32>
    tpu.vector_store %arg2[%c0_2, %c0_3], %5 {strides = array<i32>} : memref<1x8xf32, #tpu.memory_space<vmem>>, vector<1x8xf32>,
    return
  }
  func.func @transform_0(%arg0: i32) -> (i32, i32) {
    %c0_i32 = arith.constant 0 : i32
    %c0_i32_0 = arith.constant 0 : i32
    return %arg0, %c0_i32 : i32, i32
  }
  func.func @transform_1(%arg0: i32) -> (i32, i32) {
    %c0_i32 = arith.constant 0 : i32
    %c0_i32_0 = arith.constant 0 : i32
    return %c0_i32, %arg0 : i32, i32
  }
}

</mosaic_0001>

<llo_original>
// kernel: tpu_custom_call.1
$region0: #{tpu_custom_call.1}
  #allocation0 [shape = 'u32[]', space=smem, size = 0x4, offset = 0x4, fixed_abs, tag = 'smem constant byte address 0x4 - core index']
  #allocation1 [shape = 'u32[144,128]{1,0:T(1,128)}', space=vmem, size = 0x12000, scoped, tag = 'internal scratch']
  %s0 = inlined_call_operand.hbm [shape: f32[8,256], index: 0, kind: input, shape index: {}]
  %s1 = inlined_call_operand.hbm [shape: f32[1,8], index: 1, kind: output, shape index: {}]
  %s2 = sld [smem:[#allocation0]]
  $region18: #{tpu_custom_call.1} parent=0
    _
  %s4 = ssub.s32 1, %s2
  %s5 = scalar_select 0, %s4, %s2
  $region1: #{tpu_custom_call.1} parent=0
    #allocation2 [shape = 'u8[8192]{0}', space=vmem, size = 0x2000, scoped, tag = 'input window, operand 0, single buffered']
    #allocation3 [shape = 's32[1]{0}', space=sflag, size = 0x4, scoped, tag = 'scoped memory for tpu_custom_call.1']
    #allocation4 [shape = 's32[1]{0}', space=sflag, size = 0x4, scoped, tag = 'scoped memory for tpu_custom_call.1']
    #allocation5 [shape = 'u8[512]{0}', space=vmem, size = 0x400, scoped, tag = 'output window, operand 0, single buffered']
    %6 = vsyncpa [#allocation3], 0
    %7 = vsyncpa [#allocation4], 0
    // Predicated region
    $region2: #{tpu_custom_call.1} parent=1 // pred_check
      _
    $region3: #{tpu_custom_call.1} parent=1 // pred_check_branch
      %9 = sbr.rel (0) target = $region5
    $region4: #{tpu_custom_call.1} parent=1 // pred_region
      %s11 = ssub.s32 256, 256
      %12 = vsyncadd [#allocation3], %s11
      %s14 = sshll.u32 [#allocation2], 4
      %s15 = int_to_ptr.vmem [resolvable:$true] %s14
      %17 = dma.hbm_to_vmem [thread:$0]  %s0, 256, %s15, [#allocation3]
    $region5: #{tpu_custom_call.1} parent=1 // pred_fallthru
      _
    // Predicated region
    $region6: #{tpu_custom_call.1} parent=1 // pred_check
      _
    $region7: #{tpu_custom_call.1} parent=1 // pred_check_branch
      %19 = sbr.rel (0) target = $region9
    $region8: #{tpu_custom_call.1} parent=1 // pred_region
      %20 = dma.done [#allocation3], 256
    $region9: #{tpu_custom_call.1} parent=1 // pred_fallthru
      _
    %v21 = vld [vmem:[#allocation2] sm:$0xff]
    %v22 = vld [vmem:[#allocation2 + $0x8] sm:$0xff]
    %v23 = vadd.f32 %v21, %v22
    %24 = vadd.xlane.f32.xlu0 %v23
    %v25 = vpop.xlane.xlu0 %24
    %v26 = vmul.f32 %v25, 0.00390625
    %v28 = vlaneseq
    %v29 = vand.u32 %v28, 127
    %v30 = vlaneseq
    %v31 = vshrl.u32 %v30, 7
    %v32 = vsub.s32 %v29, %v31
    %v33 = vrot.slane %v26, %v32
    %vm35 = vcmask 57344
    %36 = vst.msk [vmem:[#allocation5] sm:$0x1] %vm35, %v33
    // Predicated region
    $region10: #{tpu_custom_call.1} parent=1 // pred_check
      _
    $region11: #{tpu_custom_call.1} parent=1 // pred_check_branch
      %38 = sbr.rel (0) target = $region13
    $region12: #{tpu_custom_call.1} parent=1 // pred_region
      %s40 = ssub.s32 16, 16
      %41 = vsyncadd [#allocation4], %s40
      %s43 = sshll.u32 [#allocation5], 4
      %s44 = int_to_ptr.vmem [resolvable:$true] %s43
      %46 = dma.vmem_to_hbm [thread:$0]  %s44, 16, %s1, [#allocation4]
    $region13: #{tpu_custom_call.1} parent=1 // pred_fallthru
      _
    // Predicated region
    $region14: #{tpu_custom_call.1} parent=1 // pred_check
      _
    $region15: #{tpu_custom_call.1} parent=1 // pred_check_branch
      %48 = sbr.rel (0) target = $region17
    $region16: #{tpu_custom_call.1} parent=1 // pred_region
      %49 = dma.done [#allocation4], 16
    $region17: #{tpu_custom_call.1} parent=1 // pred_fallthru
      _
    %50 = vsyncpa [#allocation3], 1
    %51 = vsyncpa [#allocation4], 1

</llo_original>
